<compile_context>
chip_gen: v7x
topology: tpu7x:2x2x1
jax: 0.10.0
libtpu: 0.0.40
codegen_flags: <defaults>
</compile_context>

<pallas_src>
import jax
import jax.numpy as jnp
from jax.experimental import pallas as pl
from jax.experimental.pallas import tpu as pltpu


def encoder_kernel(x_ref, w1_ref, b1_ref, wh_ref, bh_ref, out_ref):
    # unshared: Linear + ReLU.  MXU matmul in bf16, f32 accumulation,
    # bias-add / ReLU on the VPU in f32.
    h = jnp.dot(x_ref[...], w1_ref[...], preferred_element_type=jnp.float32)
    h = jnp.maximum(h + b1_ref[...], 0.0)

    # shared: fused head matmul -> packed [tile, 2Z] = [mu | logvar].
    # Single MXU pass, single lane-dense (128-lane) store.
    y = jnp.dot(h.astype(wh_ref.dtype), wh_ref[...],
                preferred_element_type=jnp.float32)
    out_ref[...] = (y + bh_ref[...]).astype(out_ref.dtype)


def encoder_forward(x, params, *, block_rows=None):
    """Fused encoder forward pass as a single batch-tiled Pallas kernel.

    params = (w1, b1, w_head, b_head) with
       w1:     [D_in, H]      b1:     [1, H]
       w_head: [H, 2Z]        b_head: [1, 2Z]   (columns = [mu | logvar])
    Returns (mu, logvar), each [B, Z] float32.
    """
    w1, b1, w_head, b_head = params
    batch = x.shape[0]
    d_in, hidden = w1.shape
    two_z = w_head.shape[1]
    z_dim = two_z // 2

    # Large batch tiles amortize the ~0.35 us per-grid-step overhead; tiny
    # batches collapse to a single grid step.
    if block_rows is None:
        block_rows = min(batch, 512)
    grid = (pl.cdiv(batch, block_rows),)

    # bf16 operands for the MXU (halves weight DMA traffic as well);
    # biases stay f32 and are added to the f32 accumulator.
    x_b = x.astype(jnp.bfloat16)
    w1_b = w1.astype(jnp.bfloat16)
    wh_b = w_head.astype(jnp.bfloat16)

    packed = pl.pallas_call(
        encoder_kernel,
        out_shape=jax.ShapeDtypeStruct((batch, two_z), jnp.float32),
        grid_spec=pltpu.PrefetchScalarGridSpec(
            num_scalar_prefetch=0,
            grid=grid,
            in_specs=[
                # Activations: tiled over batch.
                pl.BlockSpec((block_rows, d_in), lambda i: (i, 0)),
                # Weights / biases: grid-invariant full blocks (VMEM-resident
                # across batch tiles, no re-DMA per step).
                pl.BlockSpec((d_in, hidden), lambda i: (0, 0)),
                pl.BlockSpec((1, hidden), lambda i: (0, 0)),
                pl.BlockSpec((hidden, two_z), lambda i: (0, 0)),
                pl.BlockSpec((1, two_z), lambda i: (0, 0)),
            ],
            out_specs=pl.BlockSpec((block_rows, two_z), lambda i: (i, 0)),
        ),
        compiler_params=pltpu.CompilerParams(
            dimension_semantics=("parallel",)),
    )(x_b, w1_b, b1, wh_b, b_head)

    # Split the lane-dense packed slab into the two heads in the wrapper.
    mu = packed[:, :z_dim]
    logvar = packed[:, z_dim:]
    return mu, logvar


def init_params(key, d_in, hidden, z_dim):
    """Deterministic synthetic parameter init (PyTorch-Linear-like scaling).

    Head weights are built separately (as in the PyTorch module) and packed
    into a single [H, 2Z] weight / [1, 2Z] bias for the fused kernel.
    """
    k1, k2, k3, k4, k5, k6 = jax.random.split(key, 6)
    s1 = 1.0 / jnp.sqrt(d_in)
    s2 = 1.0 / jnp.sqrt(hidden)
    w1 = jax.random.uniform(k1, (d_in, hidden), jnp.float32, -s1, s1)
    b1 = jax.random.uniform(k2, (1, hidden), jnp.float32, -s1, s1)
    w_mu = jax.random.uniform(k3, (hidden, z_dim), jnp.float32, -s2, s2)
    b_mu = jax.random.uniform(k4, (1, z_dim), jnp.float32, -s2, s2)
    w_lv = jax.random.uniform(k5, (hidden, z_dim), jnp.float32, -s2, s2)
    b_lv = jax.random.uniform(k6, (1, z_dim), jnp.float32, -s2, s2)
    w_head = jnp.concatenate([w_mu, w_lv], axis=1)     # [H, 2Z]
    b_head = jnp.concatenate([b_mu, b_lv], axis=1)     # [1, 2Z]
    return (w1, b1, w_head, b_head), (w1, b1, w_mu, b_mu, w_lv, b_lv)


def reference_forward(x, ref_params):
    """Plain-JAX f32 reference matching the PyTorch semantics."""
    w1, b1, w_mu, b_mu, w_lv, b_lv = ref_params
    h = jnp.maximum(x @ w1 + b1, 0.0)
    return h @ w_mu + b_mu, h @ w_lv + b_lv


if __name__ == "__main__":
    # Shapes chosen on the vreg/MXU grain: batch = 8 sublanes, hidden = 128
    # lanes, latent Z = 64 so the packed head output is exactly 128 lanes.
    B, D_IN, HIDDEN, Z = 8, 64, 128, 64

    key = jax.random.PRNGKey(0)
    k_x, k_p = jax.random.split(key)
    x = jax.random.normal(k_x, (B, D_IN), jnp.float32)
    params, ref_params = init_params(k_p, D_IN, HIDDEN, Z)

    mu, logvar = encoder_forward(x, params)
    jax.block_until_ready((mu, logvar))

    # Sanity-check against the pure-f32 JAX reference (tolerances loosened
    # for the bf16 matmul operands).
    mu_ref, lv_ref = reference_forward(x, ref_params)
    assert mu.shape == (B, Z) and logvar.shape == (B, Z)
    assert jnp.allclose(mu, mu_ref, atol=5e-2, rtol=5e-2)
    assert jnp.allclose(logvar, lv_ref, atol=5e-2, rtol=5e-2)

    print("KERNEL_OK")
</pallas_src>

<mosaic_0001>
module attributes {stable_mosaic.version = 11 : i64} {
  func.func @encoder_kernel(%arg0: i32, %arg1: memref<8x64xbf16, #tpu.memory_space<vmem>>, %arg2: memref<64x128xbf16, #tpu.memory_space<vmem>>, %arg3: memref<1x128xf32, #tpu.memory_space<vmem>>, %arg4: memref<128x128xbf16, #tpu.memory_space<vmem>>, %arg5: memref<1x128xf32, #tpu.memory_space<vmem>>, %arg6: memref<8x128xf32, #tpu.memory_space<vmem>>) attributes {dimension_semantics = [#tpu.dimension_semantics<parallel>], iteration_bounds = array<i64: 1>, scalar_prefetch = 0 : i64, scratch_operands = 0 : i64, tpu.core_type = #tpu.core_type<tc>, window_params = [{transform_indices = @transform_0, window_bounds = array<i64: 8, 64>}, {pipeline_mode = #tpu.pipeline_mode<synchronous>, transform_indices = @transform_1, window_bounds = array<i64: 64, 128>}, {pipeline_mode = #tpu.pipeline_mode<synchronous>, transform_indices = @transform_2, window_bounds = array<i64: 1, 128>}, {pipeline_mode = #tpu.pipeline_mode<synchronous>, transform_indices = @transform_3, window_bounds = array<i64: 128, 128>}, {pipeline_mode = #tpu.pipeline_mode<synchronous>, transform_indices = @transform_4, window_bounds = array<i64: 1, 128>}, {transform_indices = @transform_5, window_bounds = array<i64: 8, 128>}]} {
    %c0 = arith.constant 0 : index
    %c0_0 = arith.constant 0 : index
    %0 = vector.load %arg1[%c0, %c0_0] : memref<8x64xbf16, #tpu.memory_space<vmem>>, vector<8x64xbf16>
    %c0_1 = arith.constant 0 : index
    %c0_2 = arith.constant 0 : index
    %1 = vector.load %arg2[%c0_1, %c0_2] : memref<64x128xbf16, #tpu.memory_space<vmem>>, vector<64x128xbf16>
    %cst = arith.constant dense<0.000000e+00> : vector<8x128xf32>
    %2 = tpu.matmul %0, %1, %cst {dimension_numbers = #tpu.dot_dimension_numbers<[1], [0], [0], [1], [0, 0, 1, 1], [], []>} : vector<8x64xbf16>, vector<64x128xbf16>, vector<8x128xf32> -> vector<8x128xf32>
    %c0_3 = arith.constant 0 : index
    %c0_4 = arith.constant 0 : index
    %3 = vector.load %arg3[%c0_3, %c0_4] : memref<1x128xf32, #tpu.memory_space<vmem>>, vector<1x128xf32>
    %4 = vector.broadcast %3 : vector<1x128xf32> to vector<8x128xf32>
    %5 = arith.addf %2, %4 : vector<8x128xf32>
    %cst_5 = arith.constant 0.000000e+00 : f32
    %6 = vector.broadcast %cst_5 : f32 to vector<8x128xf32>
    %7 = arith.maximumf %5, %6 : vector<8x128xf32>
    %8 = arith.truncf %7 : vector<8x128xf32> to vector<8x128xbf16>
    %c0_6 = arith.constant 0 : index
    %c0_7 = arith.constant 0 : index
    %9 = vector.load %arg4[%c0_6, %c0_7] : memref<128x128xbf16, #tpu.memory_space<vmem>>, vector<128x128xbf16>
    %cst_8 = arith.constant dense<0.000000e+00> : vector<8x128xf32>
    %10 = tpu.matmul %8, %9, %cst_8 {dimension_numbers = #tpu.dot_dimension_numbers<[1], [0], [0], [1], [0, 0, 1, 1], [], []>} : vector<8x128xbf16>, vector<128x128xbf16>, vector<8x128xf32> -> vector<8x128xf32>
    %c0_9 = arith.constant 0 : index
    %c0_10 = arith.constant 0 : index
    %11 = vector.load %arg5[%c0_9, %c0_10] : memref<1x128xf32, #tpu.memory_space<vmem>>, vector<1x128xf32>
    %12 = vector.broadcast %11 : vector<1x128xf32> to vector<8x128xf32>
    %13 = arith.addf %10, %12 : vector<8x128xf32>
    %c0_11 = arith.constant 0 : index
    %c0_12 = arith.constant 0 : index
    %14 = vector.load %arg6[%c0_11, %c0_12] : memref<8x128xf32, #tpu.memory_space<vmem>>, vector<8x128xf32>
    tpu.vector_store %arg6[%c0_11, %c0_12], %13 {strides = array<i32>} : memref<8x128xf32, #tpu.memory_space<vmem>>, vector<8x128xf32>,
    return
  }
  func.func @transform_0(%arg0: i32) -> (i32, i32) {
    %c0_i32 = arith.constant 0 : i32
    %c0_i32_0 = arith.constant 0 : i32
    return %arg0, %c0_i32 : i32, i32
  }
  func.func @transform_1(%arg0: i32) -> (i32, i32) {
    %c0_i32 = arith.constant 0 : i32
    %c0_i32_0 = arith.constant 0 : i32
    %c0_i32_1 = arith.constant 0 : i32
    return %c0_i32, %c0_i32_0 : i32, i32
  }
  func.func @transform_2(%arg0: i32) -> (i32, i32) {
    %c0_i32 = arith.constant 0 : i32
    %c0_i32_0 = arith.constant 0 : i32
    %c0_i32_1 = arith.constant 0 : i32
    return %c0_i32, %c0_i32_0 : i32, i32
  }
  func.func @transform_3(%arg0: i32) -> (i32, i32) {
    %c0_i32 = arith.constant 0 : i32
    %c0_i32_0 = arith.constant 0 : i32
    %c0_i32_1 = arith.constant 0 : i32
    return %c0_i32, %c0_i32_0 : i32, i32
  }
  func.func @transform_4(%arg0: i32) -> (i32, i32) {
    %c0_i32 = arith.constant 0 : i32
    %c0_i32_0 = arith.constant 0 : i32
    %c0_i32_1 = arith.constant 0 : i32
    return %c0_i32, %c0_i32_0 : i32, i32
  }
  func.func @transform_5(%arg0: i32) -> (i32, i32) {
    %c0_i32 = arith.constant 0 : i32
    %c0_i32_0 = arith.constant 0 : i32
    return %arg0, %c0_i32 : i32, i32
  }
}

</mosaic_0001>

<llo_original>
// kernel: tpu_custom_call.1
$region0: #{tpu_custom_call.1}
  #allocation0 [shape = 'u32[]', space=smem, size = 0x4, offset = 0x4, fixed_abs, tag = 'smem constant byte address 0x4 - core index']
  #allocation1 [shape = 'u32[144,128]{1,0:T(1,128)}', space=vmem, size = 0x12000, scoped, tag = 'internal scratch']
  %s0 = inlined_call_operand.hbm [shape: bf16[8,64], index: 0, kind: input, shape index: {}]
  %s1 = inlined_call_operand.hbm [shape: bf16[64,128], index: 1, kind: input, shape index: {}]
  %s2 = inlined_call_operand.vmem [shape: f32[1,128], index: 2, kind: input, shape index: {}]
  %s3 = inlined_call_operand.hbm [shape: bf16[128,128], index: 3, kind: input, shape index: {}]
  %s4 = inlined_call_operand.vmem [shape: f32[1,128], index: 4, kind: input, shape index: {}]
  %s5 = inlined_call_operand.hbm [shape: f32[8,128], index: 5, kind: output, shape index: {}]
  %s6 = sld [smem:[#allocation0]]
  $region42: #{tpu_custom_call.1} parent=0
    _
  %s8 = ssub.s32 1, %s6
  %s9 = scalar_select 0, %s8, %s6
  $region1: #{tpu_custom_call.1} parent=0
    #allocation2 [shape = 'u8[2048]{0}', space=vmem, size = 0x800, scoped, tag = 'input window, operand 0, single buffered']
    #allocation3 [shape = 's32[1]{0}', space=sflag, size = 0x4, scoped, tag = 'scoped memory for tpu_custom_call.1']
    #allocation4 [shape = 's32[1]{0}', space=sflag, size = 0x4, scoped, tag = 'scoped memory for tpu_custom_call.1']
    #allocation5 [shape = 'u8[16384]{0}', space=vmem, size = 0x4000, scoped, tag = 'input window, operand 1, single buffered']
    #allocation6 [shape = 's32[1]{0}', space=sflag, size = 0x4, scoped, tag = 'scoped memory for tpu_custom_call.1']
    #allocation7 [shape = 'u8[32768]{0}', space=vmem, size = 0x8000, scoped, tag = 'input window, operand 3, single buffered']
    #allocation8 [shape = 'u8[4096]{0}', space=vmem, size = 0x1000, scoped, tag = 'output window, operand 0, single buffered']
    %10 = vsyncpa [#allocation3], 0
    %11 = vsyncpa [#allocation6], 0
    %12 = vsyncpa [#allocation4], 0
    // Predicated region
    $region2: #{tpu_custom_call.1} parent=1 // pred_check
      _
    $region3: #{tpu_custom_call.1} parent=1 // pred_check_branch
      %14 = sbr.rel (0) target = $region5
    $region4: #{tpu_custom_call.1} parent=1 // pred_region
      %s16 = ssub.s32 64, 64
      %17 = vsyncadd [#allocation3], %s16
      %s19 = sshll.u32 [#allocation2], 4
      %s20 = int_to_ptr.vmem [resolvable:$true] %s19
      %22 = dma.hbm_to_vmem [thread:$0]  %s0, 64, %s20, [#allocation3]
    $region5: #{tpu_custom_call.1} parent=1 // pred_fallthru
      _
    // Predicated region
    $region6: #{tpu_custom_call.1} parent=1 // pred_check
      _
    $region7: #{tpu_custom_call.1} parent=1 // pred_check_branch
      %24 = sbr.rel (0) target = $region9
    $region8: #{tpu_custom_call.1} parent=1 // pred_region
      %s26 = ssub.s32 512, 512
      %27 = vsyncadd [#allocation6], %s26
      %s28 = sshll.u32 [#allocation5], 4
      %s29 = int_to_ptr.vmem [resolvable:$true] %s28
      %34 = dma.hbm_to_vmem [thread:$0]  %s1, 512, %s29, [#allocation6], 64, 64, 4
    $region9: #{tpu_custom_call.1} parent=1 // pred_fallthru
      _
    // Predicated region
    $region10: #{tpu_custom_call.1} parent=1 // pred_check
      _
    $region11: #{tpu_custom_call.1} parent=1 // pred_check_branch
      %36 = sbr.rel (0) target = $region13
    $region12: #{tpu_custom_call.1} parent=1 // pred_region
      _
    $region13: #{tpu_custom_call.1} parent=1 // pred_fallthru
      _
    // Predicated region
    $region14: #{tpu_custom_call.1} parent=1 // pred_check
      _
    $region15: #{tpu_custom_call.1} parent=1 // pred_check_branch
      %38 = sbr.rel (0) target = $region17
    $region16: #{tpu_custom_call.1} parent=1 // pred_region
      %s40 = ssub.s32 1024, 1024
      %41 = vsyncadd [#allocation6], %s40
      %s42 = sshll.u32 [#allocation7], 4
      %s43 = int_to_ptr.vmem [resolvable:$true] %s42
      %48 = dma.hbm_to_vmem [thread:$0]  %s3, 1024, %s43, [#allocation6], 64, 64, 4
    $region17: #{tpu_custom_call.1} parent=1 // pred_fallthru
      _
    // Predicated region
    $region18: #{tpu_custom_call.1} parent=1 // pred_check
      _
    $region19: #{tpu_custom_call.1} parent=1 // pred_check_branch
      %50 = sbr.rel (0) target = $region21
    $region20: #{tpu_custom_call.1} parent=1 // pred_region
      _
    $region21: #{tpu_custom_call.1} parent=1 // pred_fallthru
      _
    // Predicated region
    $region22: #{tpu_custom_call.1} parent=1 // pred_check
      _
    $region23: #{tpu_custom_call.1} parent=1 // pred_check_branch
      %52 = sbr.rel (0) target = $region25
    $region24: #{tpu_custom_call.1} parent=1 // pred_region
      %53 = dma.done [#allocation3], 64
    $region25: #{tpu_custom_call.1} parent=1 // pred_fallthru
      _
    // Predicated region
    $region26: #{tpu_custom_call.1} parent=1 // pred_check
      _
    $region27: #{tpu_custom_call.1} parent=1 // pred_check_branch
      %55 = sbr.rel (0) target = $region29
    $region28: #{tpu_custom_call.1} parent=1 // pred_region
      %56 = dma.done [#allocation6], 512
    $region29: #{tpu_custom_call.1} parent=1 // pred_fallthru
      _
    // Predicated region
    $region30: #{tpu_custom_call.1} parent=1 // pred_check
      _
    $region31: #{tpu_custom_call.1} parent=1 // pred_check_branch
      %58 = sbr.rel (0) target = $region33
    $region32: #{tpu_custom_call.1} parent=1 // pred_region
      %59 = dma.done [#allocation6], 1024
    $region33: #{tpu_custom_call.1} parent=1 // pred_fallthru
      _
    %v61 = vld [vmem:[#allocation2] sm:$0xf]
    %v62 = vld [vmem:[#allocation5] sm:$0xf]
    %v63 = vld [vmem:[#allocation5 + $0x4] sm:$0xf]
    %v64 = vld [vmem:[#allocation5 + $0x8] sm:$0xf]
    %v65 = vld [vmem:[#allocation5 + $0xc] sm:$0xf]
    %v66 = vld [vmem:[#allocation5 + $0x10] sm:$0xf]
    %v67 = vld [vmem:[#allocation5 + $0x14] sm:$0xf]
    %v68 = vld [vmem:[#allocation5 + $0x18] sm:$0xf]
    %v69 = vld [vmem:[#allocation5 + $0x1c] sm:$0xf]
    %v70 = vld [vmem:[%s2] sm:$0x1]
    %v72 = vlaneseq
    %v73 = vshrl.u32 %v72, 7
    %v74 = vsub.s32 0, %v73
    %v75 = vrot.slane %v70, %v74
    %v85 = vunpack.c.l.b16 %v62
    %v86 = vunpack.c.l.b16 %v63
    %v87 = vunpack.c.l.b16 %v64
    %v88 = vunpack.c.l.b16 %v65
    %v89 = vunpack.c.l.b16 %v66
    %v90 = vunpack.c.l.b16 %v67
    %v91 = vunpack.c.l.b16 %v68
    %v92 = vunpack.c.l.b16 %v69
    %v93 = vpack.c.b16 %v86, %v85
    %v94 = vpack.c.b16 %v88, %v87
    %v95 = vpack.c.b16 %v90, %v89
    %v96 = vpack.c.b16 %v92, %v91
    %vm101 = vcmask 523264
    %v103 = vsel %vm101, %v61, 0
    %105 = vmatprep.subr.bf16.mxu0 0
    %106 = vmatpush1.bf16.msra.mxu0 %v93
    %107 = vmatprep.subr.bf16.mxu0 0
    %108 = vmatpush1.bf16.msra.mxu0 %v94
    %109 = vmatprep.subr.bf16.mxu0 0
    %110 = vmatpush1.bf16.msra.mxu0 %v95
    %111 = vmatprep.subr.bf16.mxu0 0
    %112 = vmatpush1.bf16.msra.mxu0 %v96
    %113 = vmatprep.subr.bf16.mxu0 0
    %114 = vmatpush1.bf16.msra.mxu0 0
    %115 = vmatprep.subr.bf16.mxu0 0
    %116 = vmatpush1.bf16.msra.mxu0 0
    %117 = vmatprep.subr.bf16.mxu0 0
    %118 = vmatpush1.bf16.msra.mxu0 0
    %119 = vmatprep.subr.bf16.mxu0 0
    %120 = vmatpush1.bf16.msra.mxu0 0
    %121 = vmatprep.subr.bf16.mxu0 0
    %122 = vmatpush1.bf16.msra.mxu0 0
    %123 = vmatprep.subr.bf16.mxu0 0
    %124 = vmatpush1.bf16.msra.mxu0 0
    %125 = vmatprep.subr.bf16.mxu0 0
    %126 = vmatpush1.bf16.msra.mxu0 0
    %127 = vmatprep.subr.bf16.mxu0 0
    %128 = vmatpush1.bf16.msra.mxu0 0
    %129 = vmatprep.subr.bf16.mxu0 0
    %130 = vmatpush1.bf16.msra.mxu0 0
    %131 = vmatprep.subr.bf16.mxu0 0
    %132 = vmatpush1.bf16.msra.mxu0 0
    %133 = vmatprep.subr.bf16.mxu0 0
    %134 = vmatpush1.bf16.msra.mxu0 0
    %135 = vmatprep.subr.bf16.mxu0 0
    %136 = vmatpush1.bf16.msra.mxu0 0
    %137 = vmatprep.mubr.bf16.mxu0 0
    %138 = vmatmul.mubr.bf16.gmra.mrb[0].mxu0 %v103
    %v139 = vpop.f32.mrb[0].mxu0
    %v140 = vadd.f32 %v75, %v139
    %v141 = vpop.f32.mrb[0].mxu0
    %v142 = vpop.f32.mrb[0].mxu0
    %v143 = vpop.f32.mrb[0].mxu0
    %144 = vdwg.mxu0
    %v145 = vmax.f32 %v140, 0.0
    %v146 = vpack.c.bf16 %v145, %v145
    %v147 = vld [vmem:[#allocation7] sm:$0xf]
    %v148 = vld [vmem:[#allocation7 + $0x4] sm:$0xf]
    %v149 = vld [vmem:[#allocation7 + $0x8] sm:$0xf]
    %v150 = vld [vmem:[#allocation7 + $0xc] sm:$0xf]
    %v151 = vld [vmem:[#allocation7 + $0x10] sm:$0xf]
    %v152 = vld [vmem:[#allocation7 + $0x14] sm:$0xf]
    %v153 = vld [vmem:[#allocation7 + $0x18] sm:$0xf]
    %v154 = vld [vmem:[#allocation7 + $0x1c] sm:$0xf]
    %v155 = vld [vmem:[#allocation7 + $0x20] sm:$0xf]
    %v156 = vld [vmem:[#allocation7 + $0x24] sm:$0xf]
    %v157 = vld [vmem:[#allocation7 + $0x28] sm:$0xf]
    %v158 = vld [vmem:[#allocation7 + $0x2c] sm:$0xf]
    %v159 = vld [vmem:[#allocation7 + $0x30] sm:$0xf]
    %v160 = vld [vmem:[#allocation7 + $0x34] sm:$0xf]
    %v161 = vld [vmem:[#allocation7 + $0x38] sm:$0xf]
    %v162 = vld [vmem:[#allocation7 + $0x3c] sm:$0xf]
    %v163 = vld [vmem:[%s4] sm:$0x1]
    %v165 = vlaneseq
    %v166 = vshrl.u32 %v165, 7
    %v167 = vsub.s32 0, %v166
    %v168 = vrot.slane %v163, %v167
    %v186 = vunpack.c.l.b16 %v147
    %v187 = vunpack.c.l.b16 %v148
    %v188 = vunpack.c.l.b16 %v149
    %v189 = vunpack.c.l.b16 %v150
    %v190 = vunpack.c.l.b16 %v151
    %v191 = vunpack.c.l.b16 %v152
    %v192 = vunpack.c.l.b16 %v153
    %v193 = vunpack.c.l.b16 %v154
    %v194 = vunpack.c.l.b16 %v155
    %v195 = vunpack.c.l.b16 %v156
    %v196 = vunpack.c.l.b16 %v157
    %v197 = vunpack.c.l.b16 %v158
    %v198 = vunpack.c.l.b16 %v159
    %v199 = vunpack.c.l.b16 %v160
    %v200 = vunpack.c.l.b16 %v161
    %v201 = vunpack.c.l.b16 %v162
    %v202 = vpack.c.b16 %v187, %v186
    %v203 = vpack.c.b16 %v189, %v188
    %v204 = vpack.c.b16 %v191, %v190
    %v205 = vpack.c.b16 %v193, %v192
    %v206 = vpack.c.b16 %v195, %v194
    %v207 = vpack.c.b16 %v197, %v196
    %v208 = vpack.c.b16 %v199, %v198
    %v209 = vpack.c.b16 %v201, %v200
    %218 = vmatprep.subr.bf16.mxu0 0
    %219 = vmatpush1.bf16.msra.mxu0 %v202
    %220 = vmatprep.subr.bf16.mxu0 0
    %221 = vmatpush1.bf16.msra.mxu0 %v203
    %222 = vmatprep.subr.bf16.mxu0 0
    %223 = vmatpush1.bf16.msra.mxu0 %v204
    %224 = vmatprep.subr.bf16.mxu0 0
    %225 = vmatpush1.bf16.msra.mxu0 %v205
    %226 = vmatprep.subr.bf16.mxu0 0
    %227 = vmatpush1.bf16.msra.mxu0 %v206
    %228 = vmatprep.subr.bf16.mxu0 0
    %229 = vmatpush1.bf16.msra.mxu0 %v207
    %230 = vmatprep.subr.bf16.mxu0 0
    %231 = vmatpush1.bf16.msra.mxu0 %v208
    %232 = vmatprep.subr.bf16.mxu0 0
    %233 = vmatpush1.bf16.msra.mxu0 %v209
    %234 = vmatprep.subr.bf16.mxu0 0
    %235 = vmatpush1.bf16.msra.mxu0 0
    %236 = vmatprep.subr.bf16.mxu0 0
    %237 = vmatpush1.bf16.msra.mxu0 0
    %238 = vmatprep.subr.bf16.mxu0 0
    %239 = vmatpush1.bf16.msra.mxu0 0
    %240 = vmatprep.subr.bf16.mxu0 0
    %241 = vmatpush1.bf16.msra.mxu0 0
    %242 = vmatprep.subr.bf16.mxu0 0
    %243 = vmatpush1.bf16.msra.mxu0 0
    %244 = vmatprep.subr.bf16.mxu0 0
    %245 = vmatpush1.bf16.msra.mxu0 0
    %246 = vmatprep.subr.bf16.mxu0 0
    %247 = vmatpush1.bf16.msra.mxu0 0
    %248 = vmatprep.subr.bf16.mxu0 0
    %249 = vmatpush1.bf16.msra.mxu0 0
    %250 = vmatprep.mubr.bf16.mxu0 0
    %251 = vmatmul.mubr.bf16.gmra.mrb[0].mxu0 %v146
    %v252 = vpop.f32.mrb[0].mxu0
    %v253 = vadd.f32 %v168, %v252
    %v254 = vpop.f32.mrb[0].mxu0
    %v255 = vpop.f32.mrb[0].mxu0
    %v256 = vpop.f32.mrb[0].mxu0
    %257 = vdwg.mxu0
    %258 = vst [vmem:[#allocation8] sm:$0xff] %v253
    // Predicated region
    $region34: #{tpu_custom_call.1} parent=1 // pred_check
      _
    $region35: #{tpu_custom_call.1} parent=1 // pred_check_branch
      %260 = sbr.rel (0) target = $region37
    $region36: #{tpu_custom_call.1} parent=1 // pred_region
      %s262 = ssub.s32 128, 128
      %263 = vsyncadd [#allocation4], %s262
      %s265 = sshll.u32 [#allocation8], 4
      %s266 = int_to_ptr.vmem [resolvable:$true] %s265
      %268 = dma.vmem_to_hbm [thread:$0]  %s266, 128, %s5, [#allocation4]
    $region37: #{tpu_custom_call.1} parent=1 // pred_fallthru
      _
    // Predicated region
    $region38: #{tpu_custom_call.1} parent=1 // pred_check
      _
    $region39: #{tpu_custom_call.1} parent=1 // pred_check_branch
      %270 = sbr.rel (0) target = $region41
    $region40: #{tpu_custom_call.1} parent=1 // pred_region
      %271 = dma.done [#allocation4], 128
    $region41: #{tpu_custom_call.1} parent=1 // pred_fallthru
      _
    %272 = vsyncpa [#allocation3], 1
    %273 = vsyncpa [#allocation6], 1
    %274 = vsyncpa [#allocation4], 1

</llo_original>
